<compile_context>
chip_gen: v7x
topology: tpu7x:2x2x1
jax: 0.10.0
libtpu: 0.0.40
codegen_flags: <defaults>
</compile_context>

<pallas_src>
import math

import jax
import jax.numpy as jnp
import numpy as np
from jax.experimental import pallas as pl
from jax.experimental.pallas import tpu as pltpu


def rnn_forward_kernel(ids_ref, emb_ref, wih_ref, whh_ref, b_ref,
                       wcls_ref, bcls_ref, out_ref):
    """Embedding -> Elman RNN -> Linear(., 1) -> sigmoid, all in vregs.

    ids_ref   : (S*B, 1)  int32 VMEM  time-major flattened token ids
    emb_ref   : (V_pad,D) f32   VMEM  (row 0 is the zeroed padding row)
    wih_ref   : (D, D)    f32   VMEM  (= W_ih.T, so x @ wih == x @ W_ih^T)
    whh_ref   : (D, D)    f32   VMEM  (= W_hh.T)
    b_ref     : (1, D)    f32   VMEM  (= b_ih + b_hh)
    wcls_ref  : (1, D)    f32   VMEM  (classifier weight row)
    bcls_ref  : (1,)      f32   SMEM  (classifier bias scalar)
    out_ref   : (B, S)    f32   VMEM  (y_pred)
    """
    B, S = out_ref.shape
    Vp, D = emb_ref.shape
    N = S * B

    # ---- hoisted embedding gather: one one-hot matmul for ALL tokens --------
    ids_col = ids_ref[...]                                            # (N, 1)
    onehot = (jax.lax.broadcasted_iota(jnp.int32, (N, Vp), 1)
              == ids_col).astype(jnp.float32)                         # (N, Vp)
    # NOTE: out-of-range ids yield an all-zero one-hot row (zero embedding)
    # instead of raising like PyTorch would.
    x_all = jnp.dot(onehot, emb_ref[...],
                    preferred_element_type=jnp.float32)               # (N, D)

    # ---- hoisted input projection; bias added once, kept as a value ---------
    xw = jnp.dot(x_all, wih_ref[...],
                 preferred_element_type=jnp.float32) + b_ref[...]     # (N, D)

    # ---- recurrence: only  h = tanh(xw_t + h @ W_hh^T)  on the serial chain -
    whh = whh_ref[...]
    wcls_row = wcls_ref[...]                                          # (1, D)
    h = jnp.zeros((B, D), jnp.float32)
    logit_cols = []
    for t in range(S):                        # S is static -> fully unrolled
        xw_t = xw[t * B:(t + 1) * B, :]                               # (B, D)
        h = jnp.tanh(xw_t + jnp.dot(h, whh,
                                    preferred_element_type=jnp.float32))
        # classifier reduce is off the serial chain (VPU/XLU slack)
        logit_cols.append(jnp.sum(h * wcls_row, axis=-1, keepdims=True))

    # ---- epilogue: (B, S) logits directly, single lane-dense store ----------
    logits = jnp.concatenate(logit_cols, axis=1) + bcls_ref[0]        # (B, S)
    out_ref[...] = jax.nn.sigmoid(logits)
    # TODO(synk): training path (nn.functional.cross_entropy on y_pred) is not
    # implemented; only the inference branch (y is None) is reproduced.


def torch_model_forward(ids, emb, wih_t, whh_t, b, wcls_t, bcls):
    B, S = ids.shape
    V, D = emb.shape
    # Pad vocab (MXU K dim of the one-hot gather) to a multiple of 8, min 32.
    V_pad = max(32, ((V + 7) // 8) * 8)
    if V_pad != V:
        emb = jnp.zeros((V_pad, D), emb.dtype).at[:V].set(emb)
    # Time-major flattened ids: row (t*B + b) holds ids[b, t].
    ids_flat = ids.T.reshape(S * B, 1).astype(jnp.int32)
    wcls_row = wcls_t.reshape(1, D)           # (D, 1) -> (1, D)
    vmem = pl.BlockSpec(memory_space=pltpu.MemorySpace.VMEM)
    smem = pl.BlockSpec(memory_space=pltpu.MemorySpace.SMEM)
    return pl.pallas_call(
        rnn_forward_kernel,
        out_shape=jax.ShapeDtypeStruct((B, S), jnp.float32),
        in_specs=[vmem, vmem, vmem, vmem, vmem, vmem, smem],
        out_specs=vmem,
    )(ids_flat, emb, wih_t, whh_t, b, wcls_row, bcls)


def reference_forward(ids, emb, wih_t, whh_t, b, wcls_t, bcls):
    """Pure-JAX reference matching PyTorch semantics."""
    x = emb[ids]                                    # (B, S, D)
    B, S, D = x.shape
    xw = x @ wih_t + b                              # (B, S, D)
    h = jnp.zeros((B, D), jnp.float32)
    outs = []
    for t in range(S):
        h = jnp.tanh(xw[:, t] + h @ whh_t)
        outs.append(jax.nn.sigmoid(h @ wcls_t + bcls[0]))
    return jnp.concatenate(outs, axis=1)            # (B, S)


if __name__ == "__main__":
    # Small shapes consistent with the module.
    B = 4            # batch_size
    S = 8            # sentence_length
    D = 32           # vector_dim
    V = 30           # len(vocab)

    key = jax.random.PRNGKey(0)
    k_emb, k_wih, k_whh, k_bih, k_bhh, k_wc, k_bc, k_ids = jax.random.split(key, 8)

    # Deterministic parameter init (PyTorch-like uniform(-1/sqrt(D), 1/sqrt(D))).
    bound = 1.0 / math.sqrt(D)
    emb = jax.random.normal(k_emb, (V, D), jnp.float32)
    emb = emb.at[0].set(0.0)                        # padding_idx=0 -> zero row
    w_ih = jax.random.uniform(k_wih, (D, D), jnp.float32, -bound, bound)
    w_hh = jax.random.uniform(k_whh, (D, D), jnp.float32, -bound, bound)
    b_ih = jax.random.uniform(k_bih, (D,), jnp.float32, -bound, bound)
    b_hh = jax.random.uniform(k_bhh, (D,), jnp.float32, -bound, bound)
    w_cls = jax.random.uniform(k_wc, (1, D), jnp.float32, -bound, bound)
    b_cls = jax.random.uniform(k_bc, (1,), jnp.float32, -bound, bound)

    # Pre-transpose weights so the kernel right-multiplies.
    wih_t = w_ih.T                                  # (D, D)
    whh_t = w_hh.T                                  # (D, D)
    b_sum = (b_ih + b_hh).reshape(1, D)             # (1, D)
    wcls_t = w_cls.T                                # (D, 1)

    ids = jax.random.randint(k_ids, (B, S), 0, V, dtype=jnp.int32)

    y_pred = torch_model_forward(ids, emb, wih_t, whh_t, b_sum, wcls_t, b_cls)
    y_pred = jax.block_until_ready(y_pred)

    y_ref = reference_forward(ids, emb, wih_t, whh_t, b_sum, wcls_t, b_cls)
    np.testing.assert_allclose(np.asarray(y_pred), np.asarray(y_ref),
                               rtol=1e-5, atol=1e-5)
    assert y_pred.shape == (B, S) and y_pred.dtype == jnp.float32
    print("KERNEL_OK")
</pallas_src>

<mosaic_0001>
module attributes {stable_mosaic.version = 11 : i64} {
  func.func @rnn_forward_kernel(%arg0: memref<32x1xi32, #tpu.memory_space<vmem>>, %arg1: memref<32x32xf32, #tpu.memory_space<vmem>>, %arg2: memref<32x32xf32, #tpu.memory_space<vmem>>, %arg3: memref<32x32xf32, #tpu.memory_space<vmem>>, %arg4: memref<1x32xf32, #tpu.memory_space<vmem>>, %arg5: memref<1x32xf32, #tpu.memory_space<vmem>>, %arg6: memref<1xf32, #tpu.memory_space<smem>>, %arg7: memref<4x8xf32, #tpu.memory_space<vmem>>) attributes {dimension_semantics = [], scalar_prefetch = 0 : i64, scratch_operands = 0 : i64, tpu.core_type = #tpu.core_type<tc>} {
    %c0 = arith.constant 0 : index
    %c0_0 = arith.constant 0 : index
    %0 = vector.load %arg0[%c0, %c0_0] : memref<32x1xi32, #tpu.memory_space<vmem>>, vector<32x1xi32>
    %1 = tpu.iota {dimensions = array<i32: 1>} : vector<32x32xi32>
    %2 = vector.broadcast %0 : vector<32x1xi32> to vector<32x32xi32>
    %3 = arith.cmpi eq, %1, %2 : vector<32x32xi32>
    %4 = arith.extui %3 : vector<32x32xi1> to vector<32x32xi32>
    %5 = arith.sitofp %4 : vector<32x32xi32> to vector<32x32xf32>
    %c0_1 = arith.constant 0 : index
    %c0_2 = arith.constant 0 : index
    %6 = vector.load %arg1[%c0_1, %c0_2] : memref<32x32xf32, #tpu.memory_space<vmem>>, vector<32x32xf32>
    %cst = arith.constant dense<0.000000e+00> : vector<32x32xf32>
    %7 = tpu.matmul %5, %6, %cst {dimension_numbers = #tpu.dot_dimension_numbers<[1], [0], [0], [1], [0, 0, 1, 1], [], []>} : vector<32x32xf32>, vector<32x32xf32>, vector<32x32xf32> -> vector<32x32xf32>
    %c0_3 = arith.constant 0 : index
    %c0_4 = arith.constant 0 : index
    %8 = vector.load %arg2[%c0_3, %c0_4] : memref<32x32xf32, #tpu.memory_space<vmem>>, vector<32x32xf32>
    %cst_5 = arith.constant dense<0.000000e+00> : vector<32x32xf32>
    %9 = tpu.matmul %7, %8, %cst_5 {dimension_numbers = #tpu.dot_dimension_numbers<[1], [0], [0], [1], [0, 0, 1, 1], [], []>} : vector<32x32xf32>, vector<32x32xf32>, vector<32x32xf32> -> vector<32x32xf32>
    %c0_6 = arith.constant 0 : index
    %c0_7 = arith.constant 0 : index
    %10 = vector.load %arg4[%c0_6, %c0_7] : memref<1x32xf32, #tpu.memory_space<vmem>>, vector<1x32xf32>
    %11 = vector.broadcast %10 : vector<1x32xf32> to vector<32x32xf32>
    %12 = arith.addf %9, %11 : vector<32x32xf32>
    %c0_8 = arith.constant 0 : index
    %c0_9 = arith.constant 0 : index
    %13 = vector.load %arg3[%c0_8, %c0_9] : memref<32x32xf32, #tpu.memory_space<vmem>>, vector<32x32xf32>
    %c0_10 = arith.constant 0 : index
    %c0_11 = arith.constant 0 : index
    %14 = vector.load %arg5[%c0_10, %c0_11] : memref<1x32xf32, #tpu.memory_space<vmem>>, vector<1x32xf32>
    %cst_12 = arith.constant 0.000000e+00 : f32
    %15 = vector.broadcast %cst_12 : f32 to vector<4x32xf32>
    %16 = vector.extract_strided_slice %12 {offsets = [0, 0], sizes = [4, 32], strides = [1, 1]} : vector<32x32xf32> to vector<4x32xf32>
    %cst_13 = arith.constant dense<0.000000e+00> : vector<4x32xf32>
    %17 = tpu.matmul %15, %13, %cst_13 {dimension_numbers = #tpu.dot_dimension_numbers<[1], [0], [0], [1], [0, 0, 1, 1], [], []>} : vector<4x32xf32>, vector<32x32xf32>, vector<4x32xf32> -> vector<4x32xf32>
    %18 = arith.addf %16, %17 : vector<4x32xf32>
    %19 = math.tanh %18 : vector<4x32xf32>
    %20 = vector.broadcast %14 : vector<1x32xf32> to vector<4x32xf32>
    %21 = arith.mulf %19, %20 : vector<4x32xf32>
    %cst_14 = arith.constant dense<0.000000e+00> : vector<4xf32>
    %22 = vector.multi_reduction <add>, %21, %cst_14 [1] : vector<4x32xf32> to vector<4xf32>
    %23 = vector.shape_cast %22 : vector<4xf32> to vector<4x1xf32>
    %24 = vector.extract_strided_slice %12 {offsets = [4, 0], sizes = [4, 32], strides = [1, 1]} : vector<32x32xf32> to vector<4x32xf32>
    %cst_15 = arith.constant dense<0.000000e+00> : vector<4x32xf32>
    %25 = tpu.matmul %19, %13, %cst_15 {dimension_numbers = #tpu.dot_dimension_numbers<[1], [0], [0], [1], [0, 0, 1, 1], [], []>} : vector<4x32xf32>, vector<32x32xf32>, vector<4x32xf32> -> vector<4x32xf32>
    %26 = arith.addf %24, %25 : vector<4x32xf32>
    %27 = math.tanh %26 : vector<4x32xf32>
    %28 = vector.broadcast %14 : vector<1x32xf32> to vector<4x32xf32>
    %29 = arith.mulf %27, %28 : vector<4x32xf32>
    %cst_16 = arith.constant dense<0.000000e+00> : vector<4xf32>
    %30 = vector.multi_reduction <add>, %29, %cst_16 [1] : vector<4x32xf32> to vector<4xf32>
    %31 = vector.shape_cast %30 : vector<4xf32> to vector<4x1xf32>
    %32 = vector.extract_strided_slice %12 {offsets = [8, 0], sizes = [4, 32], strides = [1, 1]} : vector<32x32xf32> to vector<4x32xf32>
    %cst_17 = arith.constant dense<0.000000e+00> : vector<4x32xf32>
    %33 = tpu.matmul %27, %13, %cst_17 {dimension_numbers = #tpu.dot_dimension_numbers<[1], [0], [0], [1], [0, 0, 1, 1], [], []>} : vector<4x32xf32>, vector<32x32xf32>, vector<4x32xf32> -> vector<4x32xf32>
    %34 = arith.addf %32, %33 : vector<4x32xf32>
    %35 = math.tanh %34 : vector<4x32xf32>
    %36 = vector.broadcast %14 : vector<1x32xf32> to vector<4x32xf32>
    %37 = arith.mulf %35, %36 : vector<4x32xf32>
    %cst_18 = arith.constant dense<0.000000e+00> : vector<4xf32>
    %38 = vector.multi_reduction <add>, %37, %cst_18 [1] : vector<4x32xf32> to vector<4xf32>
    %39 = vector.shape_cast %38 : vector<4xf32> to vector<4x1xf32>
    %40 = vector.extract_strided_slice %12 {offsets = [12, 0], sizes = [4, 32], strides = [1, 1]} : vector<32x32xf32> to vector<4x32xf32>
    %cst_19 = arith.constant dense<0.000000e+00> : vector<4x32xf32>
    %41 = tpu.matmul %35, %13, %cst_19 {dimension_numbers = #tpu.dot_dimension_numbers<[1], [0], [0], [1], [0, 0, 1, 1], [], []>} : vector<4x32xf32>, vector<32x32xf32>, vector<4x32xf32> -> vector<4x32xf32>
    %42 = arith.addf %40, %41 : vector<4x32xf32>
    %43 = math.tanh %42 : vector<4x32xf32>
    %44 = vector.broadcast %14 : vector<1x32xf32> to vector<4x32xf32>
    %45 = arith.mulf %43, %44 : vector<4x32xf32>
    %cst_20 = arith.constant dense<0.000000e+00> : vector<4xf32>
    %46 = vector.multi_reduction <add>, %45, %cst_20 [1] : vector<4x32xf32> to vector<4xf32>
    %47 = vector.shape_cast %46 : vector<4xf32> to vector<4x1xf32>
    %48 = vector.extract_strided_slice %12 {offsets = [16, 0], sizes = [4, 32], strides = [1, 1]} : vector<32x32xf32> to vector<4x32xf32>
    %cst_21 = arith.constant dense<0.000000e+00> : vector<4x32xf32>
    %49 = tpu.matmul %43, %13, %cst_21 {dimension_numbers = #tpu.dot_dimension_numbers<[1], [0], [0], [1], [0, 0, 1, 1], [], []>} : vector<4x32xf32>, vector<32x32xf32>, vector<4x32xf32> -> vector<4x32xf32>
    %50 = arith.addf %48, %49 : vector<4x32xf32>
    %51 = math.tanh %50 : vector<4x32xf32>
    %52 = vector.broadcast %14 : vector<1x32xf32> to vector<4x32xf32>
    %53 = arith.mulf %51, %52 : vector<4x32xf32>
    %cst_22 = arith.constant dense<0.000000e+00> : vector<4xf32>
    %54 = vector.multi_reduction <add>, %53, %cst_22 [1] : vector<4x32xf32> to vector<4xf32>
    %55 = vector.shape_cast %54 : vector<4xf32> to vector<4x1xf32>
    %56 = vector.extract_strided_slice %12 {offsets = [20, 0], sizes = [4, 32], strides = [1, 1]} : vector<32x32xf32> to vector<4x32xf32>
    %cst_23 = arith.constant dense<0.000000e+00> : vector<4x32xf32>
    %57 = tpu.matmul %51, %13, %cst_23 {dimension_numbers = #tpu.dot_dimension_numbers<[1], [0], [0], [1], [0, 0, 1, 1], [], []>} : vector<4x32xf32>, vector<32x32xf32>, vector<4x32xf32> -> vector<4x32xf32>
    %58 = arith.addf %56, %57 : vector<4x32xf32>
    %59 = math.tanh %58 : vector<4x32xf32>
    %60 = vector.broadcast %14 : vector<1x32xf32> to vector<4x32xf32>
    %61 = arith.mulf %59, %60 : vector<4x32xf32>
    %cst_24 = arith.constant dense<0.000000e+00> : vector<4xf32>
    %62 = vector.multi_reduction <add>, %61, %cst_24 [1] : vector<4x32xf32> to vector<4xf32>
    %63 = vector.shape_cast %62 : vector<4xf32> to vector<4x1xf32>
    %64 = vector.extract_strided_slice %12 {offsets = [24, 0], sizes = [4, 32], strides = [1, 1]} : vector<32x32xf32> to vector<4x32xf32>
    %cst_25 = arith.constant dense<0.000000e+00> : vector<4x32xf32>
    %65 = tpu.matmul %59, %13, %cst_25 {dimension_numbers = #tpu.dot_dimension_numbers<[1], [0], [0], [1], [0, 0, 1, 1], [], []>} : vector<4x32xf32>, vector<32x32xf32>, vector<4x32xf32> -> vector<4x32xf32>
    %66 = arith.addf %64, %65 : vector<4x32xf32>
    %67 = math.tanh %66 : vector<4x32xf32>
    %68 = vector.broadcast %14 : vector<1x32xf32> to vector<4x32xf32>
    %69 = arith.mulf %67, %68 : vector<4x32xf32>
    %cst_26 = arith.constant dense<0.000000e+00> : vector<4xf32>
    %70 = vector.multi_reduction <add>, %69, %cst_26 [1] : vector<4x32xf32> to vector<4xf32>
    %71 = vector.shape_cast %70 : vector<4xf32> to vector<4x1xf32>
    %72 = vector.extract_strided_slice %12 {offsets = [28, 0], sizes = [4, 32], strides = [1, 1]} : vector<32x32xf32> to vector<4x32xf32>
    %cst_27 = arith.constant dense<0.000000e+00> : vector<4x32xf32>
    %73 = tpu.matmul %67, %13, %cst_27 {dimension_numbers = #tpu.dot_dimension_numbers<[1], [0], [0], [1], [0, 0, 1, 1], [], []>} : vector<4x32xf32>, vector<32x32xf32>, vector<4x32xf32> -> vector<4x32xf32>
    %74 = arith.addf %72, %73 : vector<4x32xf32>
    %75 = math.tanh %74 : vector<4x32xf32>
    %76 = vector.broadcast %14 : vector<1x32xf32> to vector<4x32xf32>
    %77 = arith.mulf %75, %76 : vector<4x32xf32>
    %cst_28 = arith.constant dense<0.000000e+00> : vector<4xf32>
    %78 = vector.multi_reduction <add>, %77, %cst_28 [1] : vector<4x32xf32> to vector<4xf32>
    %79 = vector.shape_cast %78 : vector<4xf32> to vector<4x1xf32>
    %80 = tpu.concatenate %23, %31, %39, %47, %55, %63, %71, %79 in 1 : vector<4x1xf32>, vector<4x1xf32>, vector<4x1xf32>, vector<4x1xf32>, vector<4x1xf32>, vector<4x1xf32>, vector<4x1xf32>, vector<4x1xf32> -> vector<4x8xf32>
    %c0_29 = arith.constant 0 : index
    %81 = memref.load %arg6[%c0_29] : memref<1xf32, #tpu.memory_space<smem>>
    %82 = vector.broadcast %81 : f32 to vector<4x8xf32>
    %83 = arith.addf %80, %82 : vector<4x8xf32>
    %84 = arith.negf %83 : vector<4x8xf32>
    %85 = math.exp %84 : vector<4x8xf32>
    %cst_30 = arith.constant 1.000000e+00 : f32
    %86 = vector.broadcast %cst_30 : f32 to vector<4x8xf32>
    %87 = arith.addf %86, %85 : vector<4x8xf32>
    %88 = arith.divf %86, %87 : vector<4x8xf32>
    %c0_31 = arith.constant 0 : index
    %c0_32 = arith.constant 0 : index
    %89 = vector.load %arg7[%c0_31, %c0_32] : memref<4x8xf32, #tpu.memory_space<vmem>>, vector<4x8xf32>
    tpu.vector_store %arg7[%c0_31, %c0_32], %88 {strides = array<i32>} : memref<4x8xf32, #tpu.memory_space<vmem>>, vector<4x8xf32>,
    return
  }
}

</mosaic_0001>

<llo_original>
// kernel: tpu_custom_call.1
$region0: #{tpu_custom_call.1}
  #allocation0 [shape = 'u32[]', space=smem, size = 0x4, offset = 0x4, fixed_abs, tag = 'smem constant byte address 0x4 - core index']
  #allocation1 [shape = 'u32[144,128]{1,0:T(1,128)}', space=vmem, size = 0x12000, scoped, tag = 'internal scratch']
  #allocation2 [shape = 'f32[1]{0:T(128)S(6)}', space=smem, size = 0x200, scoped, tag = 'scoped memory for tpu_custom_call.1']
  %s0 = inlined_call_operand.vmem [shape: s32[32,1], index: 0, kind: input, shape index: {}]
  %s1 = inlined_call_operand.vmem [shape: f32[32,32], index: 1, kind: input, shape index: {}]
  %s2 = inlined_call_operand.hbm [shape: f32[32,32], index: 2, kind: input, shape index: {}]
  %s3 = inlined_call_operand.hbm [shape: f32[32,32], index: 3, kind: input, shape index: {}]
  %s4 = inlined_call_operand.vmem [shape: f32[1,32], index: 4, kind: input, shape index: {}]
  %s5 = inlined_call_operand.vmem [shape: f32[1,32], index: 5, kind: input, shape index: {}]
  %s6 = inlined_call_operand.<no memory space> [shape: f32[1], index: 6, kind: input, shape index: {}]
  %s7 = inlined_call_operand.hbm [shape: f32[4,8], index: 7, kind: output, shape index: {}]
  %s8 = sld [smem:[#allocation0]]
  $region46: #{tpu_custom_call.1} parent=0
    _
  %s10 = ssub.s32 1, %s8
  %s11 = scalar_select 0, %s10, %s8
  %12 = sst [smem:[#allocation2]] %s6
  $region1: #{tpu_custom_call.1} parent=0
    #allocation3 [shape = 'u8[16384]{0}', space=vmem, size = 0x4000, scoped, tag = 'input window, operand 2, single buffered']
    #allocation4 [shape = 's32[1]{0}', space=sflag, size = 0x4, scoped, tag = 'scoped memory for tpu_custom_call.1']
    #allocation5 [shape = 's32[1]{0}', space=sflag, size = 0x4, scoped, tag = 'scoped memory for tpu_custom_call.1']
    #allocation6 [shape = 'u8[16384]{0}', space=vmem, size = 0x4000, scoped, tag = 'input window, operand 3, single buffered']
    #allocation7 [shape = 's32[1]{0}', space=sflag, size = 0x4, scoped, tag = 'scoped memory for tpu_custom_call.1']
    #allocation8 [shape = 'u8[2048]{0}', space=vmem, size = 0x800, scoped, tag = 'output window, operand 0, single buffered']
    %13 = vsyncpa [#allocation4], 0
    %14 = vsyncpa [#allocation7], 0
    %15 = vsyncpa [#allocation5], 0
    // Predicated region
    $region2: #{tpu_custom_call.1} parent=1 // pred_check
      _
    $region3: #{tpu_custom_call.1} parent=1 // pred_check_branch
      %17 = sbr.rel (0) target = $region5
    $region4: #{tpu_custom_call.1} parent=1 // pred_region
      _
    $region5: #{tpu_custom_call.1} parent=1 // pred_fallthru
      _
    // Predicated region
    $region6: #{tpu_custom_call.1} parent=1 // pred_check
      _
    $region7: #{tpu_custom_call.1} parent=1 // pred_check_branch
      %19 = sbr.rel (0) target = $region9
    $region8: #{tpu_custom_call.1} parent=1 // pred_region
      _
    $region9: #{tpu_custom_call.1} parent=1 // pred_fallthru
      _
    // Predicated region
    $region10: #{tpu_custom_call.1} parent=1 // pred_check
      _
    $region11: #{tpu_custom_call.1} parent=1 // pred_check_branch
      %21 = sbr.rel (0) target = $region13
    $region12: #{tpu_custom_call.1} parent=1 // pred_region
      %s23 = ssub.s32 512, 512
      %24 = vsyncadd [#allocation4], %s23
      %s25 = sshll.u32 [#allocation3], 4
      %s26 = int_to_ptr.vmem [resolvable:$true] %s25
      %31 = dma.hbm_to_vmem [thread:$0]  %s2, 512, %s26, [#allocation4], 128, 128, 8
    $region13: #{tpu_custom_call.1} parent=1 // pred_fallthru
      _
    // Predicated region
    $region14: #{tpu_custom_call.1} parent=1 // pred_check
      _
    $region15: #{tpu_custom_call.1} parent=1 // pred_check_branch
      %33 = sbr.rel (0) target = $region17
    $region16: #{tpu_custom_call.1} parent=1 // pred_region
      %s35 = ssub.s32 512, 512
      %36 = vsyncadd [#allocation7], %s35
      %s37 = sshll.u32 [#allocation6], 4
      %s38 = int_to_ptr.vmem [resolvable:$true] %s37
      %43 = dma.hbm_to_vmem [thread:$0]  %s3, 512, %s38, [#allocation7], 128, 128, 8
    $region17: #{tpu_custom_call.1} parent=1 // pred_fallthru
      _
    // Predicated region
    $region18: #{tpu_custom_call.1} parent=1 // pred_check
      _
    $region19: #{tpu_custom_call.1} parent=1 // pred_check_branch
      %45 = sbr.rel (0) target = $region21
    $region20: #{tpu_custom_call.1} parent=1 // pred_region
      _
    $region21: #{tpu_custom_call.1} parent=1 // pred_fallthru
      _
    // Predicated region
    $region22: #{tpu_custom_call.1} parent=1 // pred_check
      _
    $region23: #{tpu_custom_call.1} parent=1 // pred_check_branch
      %47 = sbr.rel (0) target = $region25
    $region24: #{tpu_custom_call.1} parent=1 // pred_region
      _
    $region25: #{tpu_custom_call.1} parent=1 // pred_fallthru
      _
    // Predicated region
    $region26: #{tpu_custom_call.1} parent=1 // pred_check
      _
    $region27: #{tpu_custom_call.1} parent=1 // pred_check_branch
      %49 = sbr.rel (0) target = $region29
    $region28: #{tpu_custom_call.1} parent=1 // pred_region
      _
    $region29: #{tpu_custom_call.1} parent=1 // pred_fallthru
      _
    // Predicated region
    $region30: #{tpu_custom_call.1} parent=1 // pred_check
      _
    $region31: #{tpu_custom_call.1} parent=1 // pred_check_branch
      %51 = sbr.rel (0) target = $region33
    $region32: #{tpu_custom_call.1} parent=1 // pred_region
      %52 = dma.done [#allocation4], 512
    $region33: #{tpu_custom_call.1} parent=1 // pred_fallthru
      _
    // Predicated region
    $region34: #{tpu_custom_call.1} parent=1 // pred_check
      _
    $region35: #{tpu_custom_call.1} parent=1 // pred_check_branch
      %54 = sbr.rel (0) target = $region37
    $region36: #{tpu_custom_call.1} parent=1 // pred_region
      %55 = dma.done [#allocation7], 512
    $region37: #{tpu_custom_call.1} parent=1 // pred_fallthru
      _
    %v56 = vld [vmem:[%s0] sm:$0xff]
    %v57 = vld [vmem:[%s0 + $0x8] sm:$0xff]
    %v58 = vld [vmem:[%s0 + $0x10] sm:$0xff]
    %v59 = vld [vmem:[%s0 + $0x18] sm:$0xff]
    %v60 = vlaneseq
    %v61 = vand.u32 %v60, 127
    %62 = vset.pattern.permute.xlu0 0
    %63 = vperm.xlu0 %62, %v56
    %v64 = vpop.permute.xlu0 %63
    %65 = vset.pattern.permute.xlu0 0
    %66 = vperm.xlu0 %65, %v57
    %v67 = vpop.permute.xlu0 %66
    %68 = vset.pattern.permute.xlu0 0
    %69 = vperm.xlu0 %68, %v58
    %v70 = vpop.permute.xlu0 %69
    %71 = vset.pattern.permute.xlu0 0
    %72 = vperm.xlu0 %71, %v59
    %v73 = vpop.permute.xlu0 %72
    %vm74 = vcmp.eq.s32.totalorder %v61, %v64
    %vm75 = vcmp.eq.s32.totalorder %v61, %v67
    %vm76 = vcmp.eq.s32.totalorder %v61, %v70
    %vm77 = vcmp.eq.s32.totalorder %v61, %v73
    %v78 = vsel %vm74, 1, 0
    %v79 = vsel %vm75, 1, 0
    %v80 = vsel %vm76, 1, 0
    %v81 = vsel %vm77, 1, 0
    %v82 = vcvt.s32.f32 %v78
    %v83 = vcvt.s32.f32 %v79
    %v84 = vcvt.s32.f32 %v80
    %v85 = vcvt.s32.f32 %v81
    %v86 = vld [vmem:[%s1] sm:$0xff]
    %v87 = vld [vmem:[%s1 + $0x8] sm:$0xff]
    %v88 = vld [vmem:[%s1 + $0x10] sm:$0xff]
    %v89 = vld [vmem:[%s1 + $0x18] sm:$0xff]
    %vm90 = vcmask 261120
    %v92 = vsel %vm90, %v82, 0
    %v95 = vsel %vm90, %v83, 0
    %v98 = vsel %vm90, %v84, 0
    %v101 = vsel %vm90, %v85, 0
    %103 = vmatprep.subr.mxu0 0.0
    %104 = vmatpush1.msra.mxu0 %v86
    %105 = vmatprep.subr.mxu0 0.0
    %106 = vmatpush1.msra.mxu0 %v87
    %107 = vmatprep.subr.mxu0 0.0
    %108 = vmatpush1.msra.mxu0 %v88
    %109 = vmatprep.subr.mxu0 0.0
    %110 = vmatpush1.msra.mxu0 %v89
    %111 = vmatprep.subr.mxu0 0.0
    %112 = vmatpush1.msra.mxu0 0.0
    %113 = vmatprep.subr.mxu0 0.0
    %114 = vmatpush1.msra.mxu0 0.0
    %115 = vmatprep.subr.mxu0 0.0
    %116 = vmatpush1.msra.mxu0 0.0
    %117 = vmatprep.subr.mxu0 0.0
    %118 = vmatpush1.msra.mxu0 0.0
    %119 = vmatprep.subr.mxu0 0.0
    %120 = vmatpush1.msra.mxu0 0.0
    %121 = vmatprep.subr.mxu0 0.0
    %122 = vmatpush1.msra.mxu0 0.0
    %123 = vmatprep.subr.mxu0 0.0
    %124 = vmatpush1.msra.mxu0 0.0
    %125 = vmatprep.subr.mxu0 0.0
    %126 = vmatpush1.msra.mxu0 0.0
    %127 = vmatprep.subr.mxu0 0.0
    %128 = vmatpush1.msra.mxu0 0.0
    %129 = vmatprep.subr.mxu0 0.0
    %130 = vmatpush1.msra.mxu0 0.0
    %131 = vmatprep.subr.mxu0 0.0
    %132 = vmatpush1.msra.mxu0 0.0
    %133 = vmatprep.subr.mxu0 0.0
    %134 = vmatpush1.msra.mxu0 0.0
    %135 = vmatprep.subr.mxu0 0.0
    %136 = vmatpush1.msra.mxu0 0.0
    %137 = vmatprep.subr.mxu0 0.0
    %138 = vmatpush1.msra.mxu0 0.0
    %139 = vmatprep.subr.mxu0 0.0
    %140 = vmatpush1.msra.mxu0 0.0
    %141 = vmatprep.subr.mxu0 0.0
    %142 = vmatpush1.msra.mxu0 0.0
    %143 = vmatprep.subr.mxu0 0.0
    %144 = vmatpush1.msra.mxu0 0.0
    %145 = vmatprep.subr.mxu0 0.0
    %146 = vmatpush1.msra.mxu0 0.0
    %147 = vmatprep.subr.mxu0 0.0
    %148 = vmatpush1.msra.mxu0 0.0
    %149 = vmatprep.subr.mxu0 0.0
    %150 = vmatpush1.msra.mxu0 0.0
    %151 = vmatprep.subr.mxu0 0.0
    %152 = vmatpush1.msra.mxu0 0.0
    %153 = vmatprep.subr.mxu0 0.0
    %154 = vmatpush1.msra.mxu0 0.0
    %155 = vmatprep.subr.mxu0 0.0
    %156 = vmatpush1.msra.mxu0 0.0
    %157 = vmatprep.subr.mxu0 0.0
    %158 = vmatpush1.msra.mxu0 0.0
    %159 = vmatprep.subr.mxu0 0.0
    %160 = vmatpush1.msra.mxu0 0.0
    %161 = vmatprep.subr.mxu0 0.0
    %162 = vmatpush1.msra.mxu0 0.0
    %163 = vmatprep.subr.mxu0 0.0
    %164 = vmatpush1.msra.mxu0 0.0
    %165 = vmatprep.subr.mxu0 0.0
    %166 = vmatpush1.msra.mxu0 0.0
    %167 = vmatprep.mubr.f32.mxu0 0.0
    %168 = vmatmul.mubr.f32.gmra.mrb[0].mxu0 %v92
    %v169 = vpop.f32.mrb[0].mxu0
    %v170 = vadd.f32 0.0, %v169
    %v171 = vpop.f32.mrb[0].mxu0
    %172 = vmatprep.mubr.f32.mxu0 0.0
    %173 = vmatmul.mubr.f32.gmra.mrb[0].mxu0 %v95
    %v174 = vpop.f32.mrb[0].mxu0
    %v175 = vadd.f32 0.0, %v174
    %v176 = vpop.f32.mrb[0].mxu0
    %177 = vmatprep.mubr.f32.mxu0 0.0
    %178 = vmatmul.mubr.f32.gmra.mrb[0].mxu0 %v98
    %v179 = vpop.f32.mrb[0].mxu0
    %v180 = vadd.f32 0.0, %v179
    %v181 = vpop.f32.mrb[0].mxu0
    %182 = vmatprep.mubr.f32.mxu0 0.0
    %183 = vmatmul.mubr.f32.gmra.mrb[0].mxu0 %v101
    %v184 = vpop.f32.mrb[0].mxu0
    %v185 = vadd.f32 0.0, %v184
    %v186 = vpop.f32.mrb[0].mxu0
    %187 = vdwg.mxu0
    %v188 = vld [vmem:[#allocation3] sm:$0xff]
    %v189 = vld [vmem:[#allocation3 + $0x8] sm:$0xff]
    %v190 = vld [vmem:[#allocation3 + $0x10] sm:$0xff]
    %v191 = vld [vmem:[#allocation3 + $0x18] sm:$0xff]
    %v192 = vld [vmem:[%s4] sm:$0x1]
    %v194 = vlaneseq
    %v195 = vshrl.u32 %v194, 7
    %v196 = vsub.s32 0, %v195
    %v197 = vrot.slane %v192, %v196
    %v200 = vsel %vm90, %v170, 0
    %v203 = vsel %vm90, %v175, 0
    %v206 = vsel %vm90, %v180, 0
    %v209 = vsel %vm90, %v185, 0
    %211 = vmatprep.subr.mxu0 0.0
    %212 = vmatpush1.msra.mxu0 %v188
    %213 = vmatprep.subr.mxu0 0.0
    %214 = vmatpush1.msra.mxu0 %v189
    %215 = vmatprep.subr.mxu0 0.0
    %216 = vmatpush1.msra.mxu0 %v190
    %217 = vmatprep.subr.mxu0 0.0
    %218 = vmatpush1.msra.mxu0 %v191
    %219 = vmatprep.subr.mxu0 0.0
    %220 = vmatpush1.msra.mxu0 0.0
    %221 = vmatprep.subr.mxu0 0.0
    %222 = vmatpush1.msra.mxu0 0.0
    %223 = vmatprep.subr.mxu0 0.0
    %224 = vmatpush1.msra.mxu0 0.0
    %225 = vmatprep.subr.mxu0 0.0
    %226 = vmatpush1.msra.mxu0 0.0
    %227 = vmatprep.subr.mxu0 0.0
    %228 = vmatpush1.msra.mxu0 0.0
    %229 = vmatprep.subr.mxu0 0.0
    %230 = vmatpush1.msra.mxu0 0.0
    %231 = vmatprep.subr.mxu0 0.0
    %232 = vmatpush1.msra.mxu0 0.0
    %233 = vmatprep.subr.mxu0 0.0
    %234 = vmatpush1.msra.mxu0 0.0
    %235 = vmatprep.subr.mxu0 0.0
    %236 = vmatpush1.msra.mxu0 0.0
    %237 = vmatprep.subr.mxu0 0.0
    %238 = vmatpush1.msra.mxu0 0.0
    %239 = vmatprep.subr.mxu0 0.0
    %240 = vmatpush1.msra.mxu0 0.0
    %241 = vmatprep.subr.mxu0 0.0
    %242 = vmatpush1.msra.mxu0 0.0
    %243 = vmatprep.subr.mxu0 0.0
    %244 = vmatpush1.msra.mxu0 0.0
    %245 = vmatprep.subr.mxu0 0.0
    %246 = vmatpush1.msra.mxu0 0.0
    %247 = vmatprep.subr.mxu0 0.0
    %248 = vmatpush1.msra.mxu0 0.0
    %249 = vmatprep.subr.mxu0 0.0
    %250 = vmatpush1.msra.mxu0 0.0
    %251 = vmatprep.subr.mxu0 0.0
    %252 = vmatpush1.msra.mxu0 0.0
    %253 = vmatprep.subr.mxu0 0.0
    %254 = vmatpush1.msra.mxu0 0.0
    %255 = vmatprep.subr.mxu0 0.0
    %256 = vmatpush1.msra.mxu0 0.0
    %257 = vmatprep.subr.mxu0 0.0
    %258 = vmatpush1.msra.mxu0 0.0
    %259 = vmatprep.subr.mxu0 0.0
    %260 = vmatpush1.msra.mxu0 0.0
    %261 = vmatprep.subr.mxu0 0.0
    %262 = vmatpush1.msra.mxu0 0.0
    %263 = vmatprep.subr.mxu0 0.0
    %264 = vmatpush1.msra.mxu0 0.0
    %265 = vmatprep.subr.mxu0 0.0
    %266 = vmatpush1.msra.mxu0 0.0
    %267 = vmatprep.subr.mxu0 0.0
    %268 = vmatpush1.msra.mxu0 0.0
    %269 = vmatprep.subr.mxu0 0.0
    %270 = vmatpush1.msra.mxu0 0.0
    %271 = vmatprep.subr.mxu0 0.0
    %272 = vmatpush1.msra.mxu0 0.0
    %273 = vmatprep.subr.mxu0 0.0
    %274 = vmatpush1.msra.mxu0 0.0
    %275 = vmatprep.mubr.f32.mxu0 0.0
    %276 = vmatmul.mubr.f32.gmra.mrb[0].mxu0 %v200
    %v277 = vpop.f32.mrb[0].mxu0
    %v278 = vadd.f32 %v197, %v277
    %v279 = vpop.f32.mrb[0].mxu0
    %280 = vmatprep.mubr.f32.mxu0 0.0
    %281 = vmatmul.mubr.f32.gmra.mrb[0].mxu0 %v203
    %v282 = vpop.f32.mrb[0].mxu0
    %v283 = vadd.f32 %v197, %v282
    %v284 = vpop.f32.mrb[0].mxu0
    %285 = vmatprep.mubr.f32.mxu0 0.0
    %286 = vmatmul.mubr.f32.gmra.mrb[0].mxu0 %v206
    %v287 = vpop.f32.mrb[0].mxu0
    %v288 = vadd.f32 %v197, %v287
    %v289 = vpop.f32.mrb[0].mxu0
    %290 = vmatprep.mubr.f32.mxu0 0.0
    %291 = vmatmul.mubr.f32.gmra.mrb[0].mxu0 %v209
    %v292 = vpop.f32.mrb[0].mxu0
    %v293 = vadd.f32 %v197, %v292
    %v294 = vpop.f32.mrb[0].mxu0
    %295 = vdwg.mxu0
    %v296 = vld [vmem:[#allocation6] sm:$0xff]
    %v297 = vld [vmem:[#allocation6 + $0x8] sm:$0xff]
    %v298 = vld [vmem:[#allocation6 + $0x10] sm:$0xff]
    %v299 = vld [vmem:[#allocation6 + $0x18] sm:$0xff]
    %v300 = vld [vmem:[%s5] sm:$0x1]
    %v302 = vsel %vm90, 0.0, 0
    %304 = vmatprep.subr.mxu0 0.0
    %305 = vmatpush1.msra.mxu0 %v296
    %306 = vmatprep.subr.mxu0 0.0
    %307 = vmatpush1.msra.mxu0 %v297
    %308 = vmatprep.subr.mxu0 0.0
    %309 = vmatpush1.msra.mxu0 %v298
    %310 = vmatprep.subr.mxu0 0.0
    %311 = vmatpush1.msra.mxu0 %v299
    %312 = vmatprep.subr.mxu0 0.0
    %313 = vmatpush1.msra.mxu0 0.0
    %314 = vmatprep.subr.mxu0 0.0
    %315 = vmatpush1.msra.mxu0 0.0
    %316 = vmatprep.subr.mxu0 0.0
    %317 = vmatpush1.msra.mxu0 0.0
    %318 = vmatprep.subr.mxu0 0.0
    %319 = vmatpush1.msra.mxu0 0.0
    %320 = vmatprep.subr.mxu0 0.0
    %321 = vmatpush1.msra.mxu0 0.0
    %322 = vmatprep.subr.mxu0 0.0
    %323 = vmatpush1.msra.mxu0 0.0
    %324 = vmatprep.subr.mxu0 0.0
    %325 = vmatpush1.msra.mxu0 0.0
    %326 = vmatprep.subr.mxu0 0.0
    %327 = vmatpush1.msra.mxu0 0.0
    %328 = vmatprep.subr.mxu0 0.0
    %329 = vmatpush1.msra.mxu0 0.0
    %330 = vmatprep.subr.mxu0 0.0
    %331 = vmatpush1.msra.mxu0 0.0
    %332 = vmatprep.subr.mxu0 0.0
    %333 = vmatpush1.msra.mxu0 0.0
    %334 = vmatprep.subr.mxu0 0.0
    %335 = vmatpush1.msra.mxu0 0.0
    %336 = vmatprep.subr.mxu0 0.0
    %337 = vmatpush1.msra.mxu0 0.0
    %338 = vmatprep.subr.mxu0 0.0
    %339 = vmatpush1.msra.mxu0 0.0
    %340 = vmatprep.subr.mxu0 0.0
    %341 = vmatpush1.msra.mxu0 0.0
    %342 = vmatprep.subr.mxu0 0.0
    %343 = vmatpush1.msra.mxu0 0.0
    %344 = vmatprep.subr.mxu0 0.0
    %345 = vmatpush1.msra.mxu0 0.0
    %346 = vmatprep.subr.mxu0 0.0
    %347 = vmatpush1.msra.mxu0 0.0
    %348 = vmatprep.subr.mxu0 0.0
    %349 = vmatpush1.msra.mxu0 0.0
    %350 = vmatprep.subr.mxu0 0.0
    %351 = vmatpush1.msra.mxu0 0.0
    %352 = vmatprep.subr.mxu0 0.0
    %353 = vmatpush1.msra.mxu0 0.0
    %354 = vmatprep.subr.mxu0 0.0
    %355 = vmatpush1.msra.mxu0 0.0
    %356 = vmatprep.subr.mxu0 0.0
    %357 = vmatpush1.msra.mxu0 0.0
    %358 = vmatprep.subr.mxu0 0.0
    %359 = vmatpush1.msra.mxu0 0.0
    %360 = vmatprep.subr.mxu0 0.0
    %361 = vmatpush1.msra.mxu0 0.0
    %362 = vmatprep.subr.mxu0 0.0
    %363 = vmatpush1.msra.mxu0 0.0
    %364 = vmatprep.subr.mxu0 0.0
    %365 = vmatpush1.msra.mxu0 0.0
    %366 = vmatprep.subr.mxu0 0.0
    %367 = vmatpush1.msra.mxu0 0.0
    %368 = vmatprep.mubr.f32.mxu0 0.0
    %369 = vmatmul.mubr.f32.gmra.mrb[0].mxu0 %v302
    %v370 = vpop.f32.mrb[0].mxu0
    %v371 = vadd.f32 0.0, %v370
    %v372 = vpop.f32.mrb[0].mxu0
    %373 = vdwg.mxu0
    %v374 = vadd.f32 %v278, %v371
    %v375 = vtanh.pop %v374
    %v377 = vlaneseq
    %v378 = vshrl.u32 %v377, 7
    %v379 = vsub.s32 0, %v378
    %v380 = vrot.slane %v300, %v379
    %v382 = vmul.f32 %v375, %v380
    %vm383 = vcmask 257024
    %v384 = vsel %vm383, %v382, 0.0
    %385 = vadd.xlane.f32.xlu0 %v384
    %v386 = vpop.xlane.xlu0 %385
    %v388 = vsel %vm90, %v375, 0
    %390 = vmatprep.subr.mxu0 0.0
    %391 = vmatpush1.msra.mxu0 %v296
    %392 = vmatprep.subr.mxu0 0.0
    %393 = vmatpush1.msra.mxu0 %v297
    %394 = vmatprep.subr.mxu0 0.0
    %395 = vmatpush1.msra.mxu0 %v298
    %396 = vmatprep.subr.mxu0 0.0
    %397 = vmatpush1.msra.mxu0 %v299
    %398 = vmatprep.subr.mxu0 0.0
    %399 = vmatpush1.msra.mxu0 0.0
    %400 = vmatprep.subr.mxu0 0.0
    %401 = vmatpush1.msra.mxu0 0.0
    %402 = vmatprep.subr.mxu0 0.0
    %403 = vmatpush1.msra.mxu0 0.0
    %404 = vmatprep.subr.mxu0 0.0
    %405 = vmatpush1.msra.mxu0 0.0
    %406 = vmatprep.subr.mxu0 0.0
    %407 = vmatpush1.msra.mxu0 0.0
    %408 = vmatprep.subr.mxu0 0.0
    %409 = vmatpush1.msra.mxu0 0.0
    %410 = vmatprep.subr.mxu0 0.0
    %411 = vmatpush1.msra.mxu0 0.0
    %412 = vmatprep.subr.mxu0 0.0
    %413 = vmatpush1.msra.mxu0 0.0
    %414 = vmatprep.subr.mxu0 0.0
    %415 = vmatpush1.msra.mxu0 0.0
    %416 = vmatprep.subr.mxu0 0.0
    %417 = vmatpush1.msra.mxu0 0.0
    %418 = vmatprep.subr.mxu0 0.0
    %419 = vmatpush1.msra.mxu0 0.0
    %420 = vmatprep.subr.mxu0 0.0
    %421 = vmatpush1.msra.mxu0 0.0
    %422 = vmatprep.subr.mxu0 0.0
    %423 = vmatpush1.msra.mxu0 0.0
    %424 = vmatprep.subr.mxu0 0.0
    %425 = vmatpush1.msra.mxu0 0.0
    %426 = vmatprep.subr.mxu0 0.0
    %427 = vmatpush1.msra.mxu0 0.0
    %428 = vmatprep.subr.mxu0 0.0
    %429 = vmatpush1.msra.mxu0 0.0
    %430 = vmatprep.subr.mxu0 0.0
    %431 = vmatpush1.msra.mxu0 0.0
    %432 = vmatprep.subr.mxu0 0.0
    %433 = vmatpush1.msra.mxu0 0.0
    %434 = vmatprep.subr.mxu0 0.0
    %435 = vmatpush1.msra.mxu0 0.0
    %436 = vmatprep.subr.mxu0 0.0
    %437 = vmatpush1.msra.mxu0 0.0
    %438 = vmatprep.subr.mxu0 0.0
    %439 = vmatpush1.msra.mxu0 0.0
    %440 = vmatprep.subr.mxu0 0.0
    %441 = vmatpush1.msra.mxu0 0.0
    %442 = vmatprep.subr.mxu0 0.0
    %443 = vmatpush1.msra.mxu0 0.0
    %444 = vmatprep.subr.mxu0 0.0
    %445 = vmatpush1.msra.mxu0 0.0
    %446 = vmatprep.subr.mxu0 0.0
    %447 = vmatpush1.msra.mxu0 0.0
    %448 = vmatprep.subr.mxu0 0.0
    %449 = vmatpush1.msra.mxu0 0.0
    %450 = vmatprep.subr.mxu0 0.0
    %451 = vmatpush1.msra.mxu0 0.0
    %452 = vmatprep.subr.mxu0 0.0
    %453 = vmatpush1.msra.mxu0 0.0
    %454 = vmatprep.mubr.f32.mxu0 0.0
    %455 = vmatmul.mubr.f32.gmra.mrb[0].mxu0 %v388
    %v456 = vpop.f32.mrb[0].mxu0
    %v457 = vadd.f32 0.0, %v456
    %v458 = vpop.f32.mrb[0].mxu0
    %459 = vdwg.mxu0
    %v461 = vrot.slane %v457, 4
    %v463 = vadd.f32 %v278, %v461
    %v464 = vtanh.pop %v463
    %v465 = vmul.f32 %v464, %v380
    %vm466 = vcmask 261124
    %v467 = vsel %vm466, %v465, 0.0
    %468 = vadd.xlane.f32.xlu0 %v467
    %v469 = vpop.xlane.xlu0 %468
    %v471 = vrot.slane %v464, 4
    %v472 = vsel %vm90, %v471, 0
    %474 = vmatprep.subr.mxu0 0.0
    %475 = vmatpush1.msra.mxu0 %v296
    %476 = vmatprep.subr.mxu0 0.0
    %477 = vmatpush1.msra.mxu0 %v297
    %478 = vmatprep.subr.mxu0 0.0
    %479 = vmatpush1.msra.mxu0 %v298
    %480 = vmatprep.subr.mxu0 0.0
    %481 = vmatpush1.msra.mxu0 %v299
    %482 = vmatprep.subr.mxu0 0.0
    %483 = vmatpush1.msra.mxu0 0.0
    %484 = vmatprep.subr.mxu0 0.0
    %485 = vmatpush1.msra.mxu0 0.0
    %486 = vmatprep.subr.mxu0 0.0
    %487 = vmatpush1.msra.mxu0 0.0
    %488 = vmatprep.subr.mxu0 0.0
    %489 = vmatpush1.msra.mxu0 0.0
    %490 = vmatprep.subr.mxu0 0.0
    %491 = vmatpush1.msra.mxu0 0.0
    %492 = vmatprep.subr.mxu0 0.0
    %493 = vmatpush1.msra.mxu0 0.0
    %494 = vmatprep.subr.mxu0 0.0
    %495 = vmatpush1.msra.mxu0 0.0
    %496 = vmatprep.subr.mxu0 0.0
    %497 = vmatpush1.msra.mxu0 0.0
    %498 = vmatprep.subr.mxu0 0.0
    %499 = vmatpush1.msra.mxu0 0.0
    %500 = vmatprep.subr.mxu0 0.0
    %501 = vmatpush1.msra.mxu0 0.0
    %502 = vmatprep.subr.mxu0 0.0
    %503 = vmatpush1.msra.mxu0 0.0
    %504 = vmatprep.subr.mxu0 0.0
    %505 = vmatpush1.msra.mxu0 0.0
    %506 = vmatprep.subr.mxu0 0.0
    %507 = vmatpush1.msra.mxu0 0.0
    %508 = vmatprep.subr.mxu0 0.0
    %509 = vmatpush1.msra.mxu0 0.0
    %510 = vmatprep.subr.mxu0 0.0
    %511 = vmatpush1.msra.mxu0 0.0
    %512 = vmatprep.subr.mxu0 0.0
    %513 = vmatpush1.msra.mxu0 0.0
    %514 = vmatprep.subr.mxu0 0.0
    %515 = vmatpush1.msra.mxu0 0.0
    %516 = vmatprep.subr.mxu0 0.0
    %517 = vmatpush1.msra.mxu0 0.0
    %518 = vmatprep.subr.mxu0 0.0
    %519 = vmatpush1.msra.mxu0 0.0
    %520 = vmatprep.subr.mxu0 0.0
    %521 = vmatpush1.msra.mxu0 0.0
    %522 = vmatprep.subr.mxu0 0.0
    %523 = vmatpush1.msra.mxu0 0.0
    %524 = vmatprep.subr.mxu0 0.0
    %525 = vmatpush1.msra.mxu0 0.0
    %526 = vmatprep.subr.mxu0 0.0
    %527 = vmatpush1.msra.mxu0 0.0
    %528 = vmatprep.subr.mxu0 0.0
    %529 = vmatpush1.msra.mxu0 0.0
    %530 = vmatprep.subr.mxu0 0.0
    %531 = vmatpush1.msra.mxu0 0.0
    %532 = vmatprep.subr.mxu0 0.0
    %533 = vmatpush1.msra.mxu0 0.0
    %534 = vmatprep.subr.mxu0 0.0
    %535 = vmatpush1.msra.mxu0 0.0
    %536 = vmatprep.subr.mxu0 0.0
    %537 = vmatpush1.msra.mxu0 0.0
    %538 = vmatprep.mubr.f32.mxu0 0.0
    %539 = vmatmul.mubr.f32.gmra.mrb[0].mxu0 %v472
    %v540 = vpop.f32.mrb[0].mxu0
    %v541 = vadd.f32 0.0, %v540
    %v542 = vpop.f32.mrb[0].mxu0
    %543 = vdwg.mxu0
    %v544 = vadd.f32 %v283, %v541
    %v545 = vtanh.pop %v544
    %v546 = vmul.f32 %v545, %v380
    %v547 = vsel %vm383, %v546, 0.0
    %548 = vadd.xlane.f32.xlu0 %v547
    %v549 = vpop.xlane.xlu0 %548
    %v551 = vsel %vm90, %v545, 0
    %553 = vmatprep.subr.mxu0 0.0
    %554 = vmatpush1.msra.mxu0 %v296
    %555 = vmatprep.subr.mxu0 0.0
    %556 = vmatpush1.msra.mxu0 %v297
    %557 = vmatprep.subr.mxu0 0.0
    %558 = vmatpush1.msra.mxu0 %v298
    %559 = vmatprep.subr.mxu0 0.0
    %560 = vmatpush1.msra.mxu0 %v299
    %561 = vmatprep.subr.mxu0 0.0
    %562 = vmatpush1.msra.mxu0 0.0
    %563 = vmatprep.subr.mxu0 0.0
    %564 = vmatpush1.msra.mxu0 0.0
    %565 = vmatprep.subr.mxu0 0.0
    %566 = vmatpush1.msra.mxu0 0.0
    %567 = vmatprep.subr.mxu0 0.0
    %568 = vmatpush1.msra.mxu0 0.0
    %569 = vmatprep.subr.mxu0 0.0
    %570 = vmatpush1.msra.mxu0 0.0
    %571 = vmatprep.subr.mxu0 0.0
    %572 = vmatpush1.msra.mxu0 0.0
    %573 = vmatprep.subr.mxu0 0.0
    %574 = vmatpush1.msra.mxu0 0.0
    %575 = vmatprep.subr.mxu0 0.0
    %576 = vmatpush1.msra.mxu0 0.0
    %577 = vmatprep.subr.mxu0 0.0
    %578 = vmatpush1.msra.mxu0 0.0
    %579 = vmatprep.subr.mxu0 0.0
    %580 = vmatpush1.msra.mxu0 0.0
    %581 = vmatprep.subr.mxu0 0.0
    %582 = vmatpush1.msra.mxu0 0.0
    %583 = vmatprep.subr.mxu0 0.0
    %584 = vmatpush1.msra.mxu0 0.0
    %585 = vmatprep.subr.mxu0 0.0
    %586 = vmatpush1.msra.mxu0 0.0
    %587 = vmatprep.subr.mxu0 0.0
    %588 = vmatpush1.msra.mxu0 0.0
    %589 = vmatprep.subr.mxu0 0.0
    %590 = vmatpush1.msra.mxu0 0.0
    %591 = vmatprep.subr.mxu0 0.0
    %592 = vmatpush1.msra.mxu0 0.0
    %593 = vmatprep.subr.mxu0 0.0
    %594 = vmatpush1.msra.mxu0 0.0
    %595 = vmatprep.subr.mxu0 0.0
    %596 = vmatpush1.msra.mxu0 0.0
    %597 = vmatprep.subr.mxu0 0.0
    %598 = vmatpush1.msra.mxu0 0.0
    %599 = vmatprep.subr.mxu0 0.0
    %600 = vmatpush1.msra.mxu0 0.0
    %601 = vmatprep.subr.mxu0 0.0
    %602 = vmatpush1.msra.mxu0 0.0
    %603 = vmatprep.subr.mxu0 0.0
    %604 = vmatpush1.msra.mxu0 0.0
    %605 = vmatprep.subr.mxu0 0.0
    %606 = vmatpush1.msra.mxu0 0.0
    %607 = vmatprep.subr.mxu0 0.0
    %608 = vmatpush1.msra.mxu0 0.0
    %609 = vmatprep.subr.mxu0 0.0
    %610 = vmatpush1.msra.mxu0 0.0
    %611 = vmatprep.subr.mxu0 0.0
    %612 = vmatpush1.msra.mxu0 0.0
    %613 = vmatprep.subr.mxu0 0.0
    %614 = vmatpush1.msra.mxu0 0.0
    %615 = vmatprep.subr.mxu0 0.0
    %616 = vmatpush1.msra.mxu0 0.0
    %617 = vmatprep.mubr.f32.mxu0 0.0
    %618 = vmatmul.mubr.f32.gmra.mrb[0].mxu0 %v551
    %v619 = vpop.f32.mrb[0].mxu0
    %v620 = vadd.f32 0.0, %v619
    %v621 = vpop.f32.mrb[0].mxu0
    %622 = vdwg.mxu0
    %v624 = vrot.slane %v620, 4
    %v626 = vadd.f32 %v283, %v624
    %v627 = vtanh.pop %v626
    %v628 = vmul.f32 %v627, %v380
    %v629 = vsel %vm466, %v628, 0.0
    %630 = vadd.xlane.f32.xlu0 %v629
    %v631 = vpop.xlane.xlu0 %630
    %v633 = vrot.slane %v627, 4
    %v634 = vsel %vm90, %v633, 0
    %636 = vmatprep.subr.mxu0 0.0
    %637 = vmatpush1.msra.mxu0 %v296
    %638 = vmatprep.subr.mxu0 0.0
    %639 = vmatpush1.msra.mxu0 %v297
    %640 = vmatprep.subr.mxu0 0.0
    %641 = vmatpush1.msra.mxu0 %v298
    %642 = vmatprep.subr.mxu0 0.0
    %643 = vmatpush1.msra.mxu0 %v299
    %644 = vmatprep.subr.mxu0 0.0
    %645 = vmatpush1.msra.mxu0 0.0
    %646 = vmatprep.subr.mxu0 0.0
    %647 = vmatpush1.msra.mxu0 0.0
    %648 = vmatprep.subr.mxu0 0.0
    %649 = vmatpush1.msra.mxu0 0.0
    %650 = vmatprep.subr.mxu0 0.0
    %651 = vmatpush1.msra.mxu0 0.0
    %652 = vmatprep.subr.mxu0 0.0
    %653 = vmatpush1.msra.mxu0 0.0
    %654 = vmatprep.subr.mxu0 0.0
    %655 = vmatpush1.msra.mxu0 0.0
    %656 = vmatprep.subr.mxu0 0.0
    %657 = vmatpush1.msra.mxu0 0.0
    %658 = vmatprep.subr.mxu0 0.0
    %659 = vmatpush1.msra.mxu0 0.0
    %660 = vmatprep.subr.mxu0 0.0
    %661 = vmatpush1.msra.mxu0 0.0
    %662 = vmatprep.subr.mxu0 0.0
    %663 = vmatpush1.msra.mxu0 0.0
    %664 = vmatprep.subr.mxu0 0.0
    %665 = vmatpush1.msra.mxu0 0.0
    %666 = vmatprep.subr.mxu0 0.0
    %667 = vmatpush1.msra.mxu0 0.0
    %668 = vmatprep.subr.mxu0 0.0
    %669 = vmatpush1.msra.mxu0 0.0
    %670 = vmatprep.subr.mxu0 0.0
    %671 = vmatpush1.msra.mxu0 0.0
    %672 = vmatprep.subr.mxu0 0.0
    %673 = vmatpush1.msra.mxu0 0.0
    %674 = vmatprep.subr.mxu0 0.0
    %675 = vmatpush1.msra.mxu0 0.0
    %676 = vmatprep.subr.mxu0 0.0
    %677 = vmatpush1.msra.mxu0 0.0
    %678 = vmatprep.subr.mxu0 0.0
    %679 = vmatpush1.msra.mxu0 0.0
    %680 = vmatprep.subr.mxu0 0.0
    %681 = vmatpush1.msra.mxu0 0.0
    %682 = vmatprep.subr.mxu0 0.0
    %683 = vmatpush1.msra.mxu0 0.0
    %684 = vmatprep.subr.mxu0 0.0
    %685 = vmatpush1.msra.mxu0 0.0
    %686 = vmatprep.subr.mxu0 0.0
    %687 = vmatpush1.msra.mxu0 0.0
    %688 = vmatprep.subr.mxu0 0.0
    %689 = vmatpush1.msra.mxu0 0.0
    %690 = vmatprep.subr.mxu0 0.0
    %691 = vmatpush1.msra.mxu0 0.0
    %692 = vmatprep.subr.mxu0 0.0
    %693 = vmatpush1.msra.mxu0 0.0
    %694 = vmatprep.subr.mxu0 0.0
    %695 = vmatpush1.msra.mxu0 0.0
    %696 = vmatprep.subr.mxu0 0.0
    %697 = vmatpush1.msra.mxu0 0.0
    %698 = vmatprep.subr.mxu0 0.0
    %699 = vmatpush1.msra.mxu0 0.0
    %700 = vmatprep.mubr.f32.mxu0 0.0
    %701 = vmatmul.mubr.f32.gmra.mrb[0].mxu0 %v634
    %v702 = vpop.f32.mrb[0].mxu0
    %v703 = vadd.f32 0.0, %v702
    %v704 = vpop.f32.mrb[0].mxu0
    %705 = vdwg.mxu0
    %v706 = vadd.f32 %v288, %v703
    %v707 = vtanh.pop %v706
    %v708 = vmul.f32 %v707, %v380
    %v709 = vsel %vm383, %v708, 0.0
    %710 = vadd.xlane.f32.xlu0 %v709
    %v711 = vpop.xlane.xlu0 %710
    %v713 = vsel %vm90, %v707, 0
    %715 = vmatprep.subr.mxu0 0.0
    %716 = vmatpush1.msra.mxu0 %v296
    %717 = vmatprep.subr.mxu0 0.0
    %718 = vmatpush1.msra.mxu0 %v297
    %719 = vmatprep.subr.mxu0 0.0
    %720 = vmatpush1.msra.mxu0 %v298
    %721 = vmatprep.subr.mxu0 0.0
    %722 = vmatpush1.msra.mxu0 %v299
    %723 = vmatprep.subr.mxu0 0.0
    %724 = vmatpush1.msra.mxu0 0.0
    %725 = vmatprep.subr.mxu0 0.0
    %726 = vmatpush1.msra.mxu0 0.0
    %727 = vmatprep.subr.mxu0 0.0
    %728 = vmatpush1.msra.mxu0 0.0
    %729 = vmatprep.subr.mxu0 0.0
    %730 = vmatpush1.msra.mxu0 0.0
    %731 = vmatprep.subr.mxu0 0.0
    %732 = vmatpush1.msra.mxu0 0.0
    %733 = vmatprep.subr.mxu0 0.0
    %734 = vmatpush1.msra.mxu0 0.0
    %735 = vmatprep.subr.mxu0 0.0
    %736 = vmatpush1.msra.mxu0 0.0
    %737 = vmatprep.subr.mxu0 0.0
    %738 = vmatpush1.msra.mxu0 0.0
    %739 = vmatprep.subr.mxu0 0.0
    %740 = vmatpush1.msra.mxu0 0.0
    %741 = vmatprep.subr.mxu0 0.0
    %742 = vmatpush1.msra.mxu0 0.0
    %743 = vmatprep.subr.mxu0 0.0
    %744 = vmatpush1.msra.mxu0 0.0
    %745 = vmatprep.subr.mxu0 0.0
    %746 = vmatpush1.msra.mxu0 0.0
    %747 = vmatprep.subr.mxu0 0.0
    %748 = vmatpush1.msra.mxu0 0.0
    %749 = vmatprep.subr.mxu0 0.0
    %750 = vmatpush1.msra.mxu0 0.0
    %751 = vmatprep.subr.mxu0 0.0
    %752 = vmatpush1.msra.mxu0 0.0
    %753 = vmatprep.subr.mxu0 0.0
    %754 = vmatpush1.msra.mxu0 0.0
    %755 = vmatprep.subr.mxu0 0.0
    %756 = vmatpush1.msra.mxu0 0.0
    %757 = vmatprep.subr.mxu0 0.0
    %758 = vmatpush1.msra.mxu0 0.0
    %759 = vmatprep.subr.mxu0 0.0
    %760 = vmatpush1.msra.mxu0 0.0
    %761 = vmatprep.subr.mxu0 0.0
    %762 = vmatpush1.msra.mxu0 0.0
    %763 = vmatprep.subr.mxu0 0.0
    %764 = vmatpush1.msra.mxu0 0.0
    %765 = vmatprep.subr.mxu0 0.0
    %766 = vmatpush1.msra.mxu0 0.0
    %767 = vmatprep.subr.mxu0 0.0
    %768 = vmatpush1.msra.mxu0 0.0
    %769 = vmatprep.subr.mxu0 0.0
    %770 = vmatpush1.msra.mxu0 0.0
    %771 = vmatprep.subr.mxu0 0.0
    %772 = vmatpush1.msra.mxu0 0.0
    %773 = vmatprep.subr.mxu0 0.0
    %774 = vmatpush1.msra.mxu0 0.0
    %775 = vmatprep.subr.mxu0 0.0
    %776 = vmatpush1.msra.mxu0 0.0
    %777 = vmatprep.subr.mxu0 0.0
    %778 = vmatpush1.msra.mxu0 0.0
    %779 = vmatprep.mubr.f32.mxu0 0.0
    %780 = vmatmul.mubr.f32.gmra.mrb[0].mxu0 %v713
    %v781 = vpop.f32.mrb[0].mxu0
    %v782 = vadd.f32 0.0, %v781
    %v783 = vpop.f32.mrb[0].mxu0
    %784 = vdwg.mxu0
    %v786 = vrot.slane %v782, 4
    %v788 = vadd.f32 %v288, %v786
    %v789 = vtanh.pop %v788
    %v790 = vmul.f32 %v789, %v380
    %v791 = vsel %vm466, %v790, 0.0
    %792 = vadd.xlane.f32.xlu0 %v791
    %v793 = vpop.xlane.xlu0 %792
    %v795 = vrot.slane %v789, 4
    %v796 = vsel %vm90, %v795, 0
    %798 = vmatprep.subr.mxu0 0.0
    %799 = vmatpush1.msra.mxu0 %v296
    %800 = vmatprep.subr.mxu0 0.0
    %801 = vmatpush1.msra.mxu0 %v297
    %802 = vmatprep.subr.mxu0 0.0
    %803 = vmatpush1.msra.mxu0 %v298
    %804 = vmatprep.subr.mxu0 0.0
    %805 = vmatpush1.msra.mxu0 %v299
    %806 = vmatprep.subr.mxu0 0.0
    %807 = vmatpush1.msra.mxu0 0.0
    %808 = vmatprep.subr.mxu0 0.0
    %809 = vmatpush1.msra.mxu0 0.0
    %810 = vmatprep.subr.mxu0 0.0
    %811 = vmatpush1.msra.mxu0 0.0
    %812 = vmatprep.subr.mxu0 0.0
    %813 = vmatpush1.msra.mxu0 0.0
    %814 = vmatprep.subr.mxu0 0.0
    %815 = vmatpush1.msra.mxu0 0.0
    %816 = vmatprep.subr.mxu0 0.0
    %817 = vmatpush1.msra.mxu0 0.0
    %818 = vmatprep.subr.mxu0 0.0
    %819 = vmatpush1.msra.mxu0 0.0
    %820 = vmatprep.subr.mxu0 0.0
    %821 = vmatpush1.msra.mxu0 0.0
    %822 = vmatprep.subr.mxu0 0.0
    %823 = vmatpush1.msra.mxu0 0.0
    %824 = vmatprep.subr.mxu0 0.0
    %825 = vmatpush1.msra.mxu0 0.0
    %826 = vmatprep.subr.mxu0 0.0
    %827 = vmatpush1.msra.mxu0 0.0
    %828 = vmatprep.subr.mxu0 0.0
    %829 = vmatpush1.msra.mxu0 0.0
    %830 = vmatprep.subr.mxu0 0.0
    %831 = vmatpush1.msra.mxu0 0.0
    %832 = vmatprep.subr.mxu0 0.0
    %833 = vmatpush1.msra.mxu0 0.0
    %834 = vmatprep.subr.mxu0 0.0
    %835 = vmatpush1.msra.mxu0 0.0
    %836 = vmatprep.subr.mxu0 0.0
    %837 = vmatpush1.msra.mxu0 0.0
    %838 = vmatprep.subr.mxu0 0.0
    %839 = vmatpush1.msra.mxu0 0.0
    %840 = vmatprep.subr.mxu0 0.0
    %841 = vmatpush1.msra.mxu0 0.0
    %842 = vmatprep.subr.mxu0 0.0
    %843 = vmatpush1.msra.mxu0 0.0
    %844 = vmatprep.subr.mxu0 0.0
    %845 = vmatpush1.msra.mxu0 0.0
    %846 = vmatprep.subr.mxu0 0.0
    %847 = vmatpush1.msra.mxu0 0.0
    %848 = vmatprep.subr.mxu0 0.0
    %849 = vmatpush1.msra.mxu0 0.0
    %850 = vmatprep.subr.mxu0 0.0
    %851 = vmatpush1.msra.mxu0 0.0
    %852 = vmatprep.subr.mxu0 0.0
    %853 = vmatpush1.msra.mxu0 0.0
    %854 = vmatprep.subr.mxu0 0.0
    %855 = vmatpush1.msra.mxu0 0.0
    %856 = vmatprep.subr.mxu0 0.0
    %857 = vmatpush1.msra.mxu0 0.0
    %858 = vmatprep.subr.mxu0 0.0
    %859 = vmatpush1.msra.mxu0 0.0
    %860 = vmatprep.subr.mxu0 0.0
    %861 = vmatpush1.msra.mxu0 0.0
    %862 = vmatprep.mubr.f32.mxu0 0.0
    %863 = vmatmul.mubr.f32.gmra.mrb[0].mxu0 %v796
    %v864 = vpop.f32.mrb[0].mxu0
    %v865 = vadd.f32 0.0, %v864
    %v866 = vpop.f32.mrb[0].mxu0
    %867 = vdwg.mxu0
    %v868 = vadd.f32 %v293, %v865
    %v869 = vtanh.pop %v868
    %v870 = vmul.f32 %v869, %v380
    %v871 = vsel %vm383, %v870, 0.0
    %872 = vadd.xlane.f32.xlu0 %v871
    %v873 = vpop.xlane.xlu0 %872
    %v875 = vsel %vm90, %v869, 0
    %877 = vmatprep.subr.mxu0 0.0
    %878 = vmatpush1.msra.mxu0 %v296
    %879 = vmatprep.subr.mxu0 0.0
    %880 = vmatpush1.msra.mxu0 %v297
    %881 = vmatprep.subr.mxu0 0.0
    %882 = vmatpush1.msra.mxu0 %v298
    %883 = vmatprep.subr.mxu0 0.0
    %884 = vmatpush1.msra.mxu0 %v299
    %885 = vmatprep.subr.mxu0 0.0
    %886 = vmatpush1.msra.mxu0 0.0
    %887 = vmatprep.subr.mxu0 0.0
    %888 = vmatpush1.msra.mxu0 0.0
    %889 = vmatprep.subr.mxu0 0.0
    %890 = vmatpush1.msra.mxu0 0.0
    %891 = vmatprep.subr.mxu0 0.0
    %892 = vmatpush1.msra.mxu0 0.0
    %893 = vmatprep.subr.mxu0 0.0
    %894 = vmatpush1.msra.mxu0 0.0
    %895 = vmatprep.subr.mxu0 0.0
    %896 = vmatpush1.msra.mxu0 0.0
    %897 = vmatprep.subr.mxu0 0.0
    %898 = vmatpush1.msra.mxu0 0.0
    %899 = vmatprep.subr.mxu0 0.0
    %900 = vmatpush1.msra.mxu0 0.0
    %901 = vmatprep.subr.mxu0 0.0
    %902 = vmatpush1.msra.mxu0 0.0
    %903 = vmatprep.subr.mxu0 0.0
    %904 = vmatpush1.msra.mxu0 0.0
    %905 = vmatprep.subr.mxu0 0.0
    %906 = vmatpush1.msra.mxu0 0.0
    %907 = vmatprep.subr.mxu0 0.0
    %908 = vmatpush1.msra.mxu0 0.0
    %909 = vmatprep.subr.mxu0 0.0
    %910 = vmatpush1.msra.mxu0 0.0
    %911 = vmatprep.subr.mxu0 0.0
    %912 = vmatpush1.msra.mxu0 0.0
    %913 = vmatprep.subr.mxu0 0.0
    %914 = vmatpush1.msra.mxu0 0.0
    %915 = vmatprep.subr.mxu0 0.0
    %916 = vmatpush1.msra.mxu0 0.0
    %917 = vmatprep.subr.mxu0 0.0
    %918 = vmatpush1.msra.mxu0 0.0
    %919 = vmatprep.subr.mxu0 0.0
    %920 = vmatpush1.msra.mxu0 0.0
    %921 = vmatprep.subr.mxu0 0.0
    %922 = vmatpush1.msra.mxu0 0.0
    %923 = vmatprep.subr.mxu0 0.0
    %924 = vmatpush1.msra.mxu0 0.0
    %925 = vmatprep.subr.mxu0 0.0
    %926 = vmatpush1.msra.mxu0 0.0
    %927 = vmatprep.subr.mxu0 0.0
    %928 = vmatpush1.msra.mxu0 0.0
    %929 = vmatprep.subr.mxu0 0.0
    %930 = vmatpush1.msra.mxu0 0.0
    %931 = vmatprep.subr.mxu0 0.0
    %932 = vmatpush1.msra.mxu0 0.0
    %933 = vmatprep.subr.mxu0 0.0
    %934 = vmatpush1.msra.mxu0 0.0
    %935 = vmatprep.subr.mxu0 0.0
    %936 = vmatpush1.msra.mxu0 0.0
    %937 = vmatprep.subr.mxu0 0.0
    %938 = vmatpush1.msra.mxu0 0.0
    %939 = vmatprep.subr.mxu0 0.0
    %940 = vmatpush1.msra.mxu0 0.0
    %941 = vmatprep.mubr.f32.mxu0 0.0
    %942 = vmatmul.mubr.f32.gmra.mrb[0].mxu0 %v875
    %v943 = vpop.f32.mrb[0].mxu0
    %v944 = vadd.f32 0.0, %v943
    %v945 = vpop.f32.mrb[0].mxu0
    %946 = vdwg.mxu0
    %v948 = vrot.slane %v944, 4
    %v950 = vadd.f32 %v293, %v948
    %v951 = vtanh.pop %v950
    %v952 = vmul.f32 %v951, %v380
    %v953 = vsel %vm466, %v952, 0.0
    %954 = vadd.xlane.f32.xlu0 %v953
    %v955 = vpop.xlane.xlu0 %954
    %v957 = vrot.slane %v469, 4
    %v960 = vrot.slane %v631, 4
    %v963 = vrot.slane %v793, 4
    %v966 = vrot.slane %v955, 4
    %vm968 = vcmask 7168
    %v969 = vsel %vm968, %v386, %v957
    %vm970 = vcmask 15360
    %v971 = vsel %vm970, %v969, %v549
    %vm972 = vcmask 23552
    %v973 = vsel %vm972, %v971, %v960
    %vm974 = vcmask 31744
    %v975 = vsel %vm974, %v973, %v711
    %vm976 = vcmask 39936
    %v977 = vsel %vm976, %v975, %v963
    %vm978 = vcmask 48128
    %v979 = vsel %vm978, %v977, %v873
    %vm980 = vcmask 56320
    %v981 = vsel %vm980, %v979, %v966
    %s982 = sld [smem:[#allocation2]]
    %v983 = vstv %s982
    %v984 = vadd.f32 %v981, %v983
    %v985 = vxor.u32 %v984, 2147483648
    %v986 = vmul.f32 %v985, 1.442695
    %v987 = vpow.pop %v986
    %v988 = vadd.f32 %v987, 1.0
    %v989 = vrcp.pop %v988
    %v990 = vmul.f32 1.0, %v989
    %vm991 = vcmask 60416
    %992 = vst.msk [vmem:[#allocation8] sm:$0xf] %vm991, %v990
    // Predicated region
    $region38: #{tpu_custom_call.1} parent=1 // pred_check
      _
    $region39: #{tpu_custom_call.1} parent=1 // pred_check_branch
      %994 = sbr.rel (0) target = $region41
    $region40: #{tpu_custom_call.1} parent=1 // pred_region
      %s996 = ssub.s32 64, 64
      %997 = vsyncadd [#allocation5], %s996
      %s999 = sshll.u32 [#allocation8], 4
      %s1000 = int_to_ptr.vmem [resolvable:$true] %s999
      %1002 = dma.vmem_to_hbm [thread:$0]  %s1000, 64, %s7, [#allocation5]
    $region41: #{tpu_custom_call.1} parent=1 // pred_fallthru
      _
    // Predicated region
    $region42: #{tpu_custom_call.1} parent=1 // pred_check
      _
    $region43: #{tpu_custom_call.1} parent=1 // pred_check_branch
      %1004 = sbr.rel (0) target = $region45
    $region44: #{tpu_custom_call.1} parent=1 // pred_region
      %1005 = dma.done [#allocation5], 64
    $region45: #{tpu_custom_call.1} parent=1 // pred_fallthru
      _
    %1006 = vsyncpa [#allocation4], 1
    %1007 = vsyncpa [#allocation7], 1
    %1008 = vsyncpa [#allocation5], 1

</llo_original>
